<compile_context>
chip_gen: v7x
topology: tpu7x:2x2x1
jax: 0.10.0
libtpu: 0.0.40
codegen_flags: <defaults>
</compile_context>

<pallas_src>
import functools

import jax
import jax.numpy as jnp
from jax.experimental import pallas as pl
from jax.experimental.pallas import tpu as pltpu


# ----------------------------------------------------------------------------
# Layer geometry / weight-slab layout.
#
# One (128, 128) f32 slab holds every parameter.  Layer l lives in a 32-row
# slot starting at _ROW_OFFS[l]:
#   rows [r, r+dout)      cols [0, din)  : W (PyTorch (out, in) orientation)
#   rows [r, r+dout)      col  din       : bias (hits the input's ones lane)
#   row   r+dout          col  din       : 1.0  (propagates the ones lane)
# Everything else is zero, so the 8-aligned padded slices used in the kernel
# contribute nothing to the dot.
# ----------------------------------------------------------------------------
_LAYER_DIMS = ((20, 6), (20, 20), (20, 20), (4, 20))   # (out, in) per layer
_ROW_OFFS = (0, 32, 64, 96)
_PAD_IN = (8, 24, 24, 24)     # sublane-padded contraction width per layer
_PAD_OUT = (24, 24, 24, 8)    # sublane-padded output rows per layer (incl. ones lane)

_TILE_QUANTUM = 512           # lane width (128) * v6e/v7x 256-stream friendly
_MAX_TILE_B = 16384           # ~6-8 MB of VMEM per tile incl. intermediates


def pack_params(params):
    """Pack PyTorch-layout weights (out,in) and biases (out,) into one slab."""
    slab = jnp.zeros((128, 128), jnp.float32)
    n_layers = len(_LAYER_DIMS)
    for idx, (r, (dout, din)) in enumerate(zip(_ROW_OFFS, _LAYER_DIMS)):
        w = jnp.asarray(params[f"w{idx + 1}"], jnp.float32)   # (out, in)
        b = jnp.asarray(params[f"b{idx + 1}"], jnp.float32)   # (out,)
        assert w.shape == (dout, din) and b.shape == (dout,)
        # Guard against silent overlap if layer sizes ever change.
        assert dout + 1 <= _PAD_OUT[idx] <= 32, "layer outputs overflow 32-row slot"
        assert din + 1 <= _PAD_IN[idx] <= 128, "layer inputs overflow padded width"
        assert r % 8 == 0 and r + _PAD_OUT[idx] <= 128
        if idx + 1 < n_layers:
            assert _LAYER_DIMS[idx + 1][1] == dout, "layer chain mismatch"
            assert _PAD_IN[idx + 1] == _PAD_OUT[idx], "padded widths must chain"
        slab = slab.at[r:r + dout, :din].set(w)
        slab = slab.at[r:r + dout, din].set(b)        # bias column == input ones lane
        if idx + 1 < n_layers:
            slab = slab.at[r + dout, din].set(1.0)    # carry the ones lane forward
    return slab


# ----------------------------------------------------------------------------
# Kernel: one batch tile, whole MLP in VMEM, (features, batch) layout.
# ----------------------------------------------------------------------------
def mlnet_kernel(x_ref, slab_ref, o_ref, *, use_bf16):
    h = x_ref[...]                                   # (8, TB): 6 feats, ones, pad

    def layer(h, idx, relu):
        r = _ROW_OFFS[idx]
        n_out, n_in = _PAD_OUT[idx], _PAD_IN[idx]
        w = slab_ref[r:r + n_out, :n_in]             # static, 8-aligned slice
        if use_bf16:                                 # opt-in MXU speedup (v5e esp.)
            w = w.astype(jnp.bfloat16)
            h = h.astype(jnp.bfloat16)
        y = jnp.dot(w, h, preferred_element_type=jnp.float32)   # bias folded in
        return jnp.maximum(y, 0.0) if relu else y    # relu(1)=1 keeps ones lane alive

    h = layer(h, 0, relu=True)                       # (24, TB)
    h = layer(h, 1, relu=True)                       # (24, TB)
    h = layer(h, 2, relu=True)                       # (24, TB)
    z = layer(h, 3, relu=False)[: _LAYER_DIMS[-1][0]]   # (4, TB) logits
    # Numerically stable softplus (matches PyTorch Softplus to fp32 precision).
    o_ref[...] = (jnp.maximum(z, 0.0)
                  + jnp.log1p(jnp.exp(-jnp.abs(z)))).astype(o_ref.dtype)


# ----------------------------------------------------------------------------
# Wrapper: (B, 6) -> (B, 4) (or (4, B) with transposed_output=True).
# ----------------------------------------------------------------------------
def _auto_tile_b(batch):
    # Aim for >= 2 grid steps so a v7x chip uses both TensorCores, round to a
    # 512 multiple, cap for VMEM.  At the cap each step moves ~0.8 MB of HBM,
    # amortizing the ~0.35 us per-step overhead.
    target = pl.cdiv(batch, 2)
    tile = pl.cdiv(target, _TILE_QUANTUM) * _TILE_QUANTUM
    return int(max(_TILE_QUANTUM, min(_MAX_TILE_B, tile)))


@functools.partial(jax.jit,
                   static_argnames=("tile_b", "use_bf16", "transposed_output"))
def mlnet_forward(x, params, *, tile_b=None, use_bf16=False,
                  transposed_output=False):
    B, din = x.shape
    assert din == _LAYER_DIMS[0][1], "MLNet expects 6 input features"
    if tile_b is None:
        tile_b = _auto_tile_b(B)
    assert tile_b % _TILE_QUANTUM == 0, "tile_b must be a multiple of 512"

    dout = _LAYER_DIMS[-1][0]
    pad_in = _PAD_IN[0]
    n_tiles = pl.cdiv(B, tile_b)
    b_pad = n_tiles * tile_b
    slab = pack_params(params)

    # Lane-dense augmented input: rows 0..5 features, row 6 = 1 (bias lane),
    # remaining pad rows multiply zero weight columns.  Single fusable
    # transpose+pad+concat pass (no zeros+scatter).
    xt = x.astype(jnp.float32).T                                  # (6, B)
    x_t = jnp.concatenate(
        [jnp.pad(xt, ((0, 0), (0, b_pad - B))),
         jnp.ones((1, b_pad), jnp.float32),
         jnp.zeros((pad_in - din - 1, b_pad), jnp.float32)],
        axis=0)                                                   # (8, b_pad)

    grid_spec = pltpu.PrefetchScalarGridSpec(
        num_scalar_prefetch=0,
        grid=(n_tiles,),
        in_specs=[
            pl.BlockSpec((pad_in, tile_b), lambda i: (0, i)),     # x tile
            pl.BlockSpec((128, 128), lambda i: (0, 0)),           # resident weight slab
        ],
        out_specs=pl.BlockSpec((dout, tile_b), lambda i: (0, i)),
    )

    out_t = pl.pallas_call(
        functools.partial(mlnet_kernel, use_bf16=use_bf16),
        out_shape=jax.ShapeDtypeStruct((dout, b_pad), jnp.float32),
        grid_spec=grid_spec,
        compiler_params=pltpu.CompilerParams(
            dimension_semantics=("parallel",),
            vmem_limit_bytes=32 * 1024 * 1024,
        ),
    )(x_t, slab)

    out_t = out_t[:, :B]                             # (4, B)
    return out_t if transposed_output else out_t.T   # (B, 4) matches PyTorch


# ----------------------------------------------------------------------------
# Init + pure-JAX reference (PyTorch nn.Linear default init / layout).
# ----------------------------------------------------------------------------
def init_params(key):
    params = {}
    for idx, (fan_out, fan_in) in enumerate(_LAYER_DIMS, start=1):
        key, kw, kb = jax.random.split(key, 3)
        bound = 1.0 / jnp.sqrt(fan_in)
        params[f"w{idx}"] = jax.random.uniform(
            kw, (fan_out, fan_in), jnp.float32, -bound, bound)
        params[f"b{idx}"] = jax.random.uniform(
            kb, (fan_out,), jnp.float32, -bound, bound)
    return params


def mlnet_reference(x, params):
    h = jnp.maximum(x @ params["w1"].T + params["b1"], 0.0)
    h = jnp.maximum(h @ params["w2"].T + params["b2"], 0.0)
    h = jnp.maximum(h @ params["w3"].T + params["b3"], 0.0)
    z = h @ params["w4"].T + params["b4"]
    return jax.nn.softplus(z)


if __name__ == "__main__":
    key = jax.random.PRNGKey(0)
    kp, kx = jax.random.split(key)

    params = init_params(kp)
    B = 200                                  # deliberately NOT a tile multiple
    x = jax.random.normal(kx, (B, 6), dtype=jnp.float32)

    out = jax.block_until_ready(mlnet_forward(x, params))  # auto tile_b

    ref = mlnet_reference(x, params)
    assert out.shape == (B, 4)
    assert jnp.allclose(out, ref, atol=1e-5, rtol=1e-5), "mismatch vs reference"

    print("KERNEL_OK")
</pallas_src>

<mosaic_0001>
module attributes {stable_mosaic.version = 11 : i64} {
  func.func @mlnet_kernel(%arg0: i32, %arg1: memref<8x512xf32, #tpu.memory_space<vmem>>, %arg2: memref<128x128xf32, #tpu.memory_space<vmem>>, %arg3: memref<4x512xf32, #tpu.memory_space<vmem>>) attributes {dimension_semantics = [#tpu.dimension_semantics<parallel>], iteration_bounds = array<i64: 1>, scalar_prefetch = 0 : i64, scratch_operands = 0 : i64, tpu.core_type = #tpu.core_type<tc>, window_params = [{transform_indices = @transform_0, window_bounds = array<i64: 8, 512>}, {pipeline_mode = #tpu.pipeline_mode<synchronous>, transform_indices = @transform_1, window_bounds = array<i64: 128, 128>}, {transform_indices = @transform_2, window_bounds = array<i64: 4, 512>}]} {
    %c0 = arith.constant 0 : index
    %c0_0 = arith.constant 0 : index
    %0 = vector.load %arg1[%c0, %c0_0] : memref<8x512xf32, #tpu.memory_space<vmem>>, vector<8x512xf32>
    %c0_1 = arith.constant 0 : index
    %c0_2 = arith.constant 0 : index
    %1 = vector.load %arg2[%c0_1, %c0_2] : memref<128x128xf32, #tpu.memory_space<vmem>>, vector<24x8xf32>
    %cst = arith.constant dense<0.000000e+00> : vector<24x512xf32>
    %2 = tpu.matmul %1, %0, %cst {dimension_numbers = #tpu.dot_dimension_numbers<[1], [0], [0], [1], [0, 0, 1, 1], [], []>} : vector<24x8xf32>, vector<8x512xf32>, vector<24x512xf32> -> vector<24x512xf32>
    %cst_3 = arith.constant 0.000000e+00 : f32
    %3 = vector.broadcast %cst_3 : f32 to vector<24x512xf32>
    %4 = arith.maximumf %2, %3 : vector<24x512xf32>
    %c32 = arith.constant 32 : index
    %c0_4 = arith.constant 0 : index
    %5 = vector.load %arg2[%c32, %c0_4] : memref<128x128xf32, #tpu.memory_space<vmem>>, vector<24x24xf32>
    %cst_5 = arith.constant dense<0.000000e+00> : vector<24x512xf32>
    %6 = tpu.matmul %5, %4, %cst_5 {dimension_numbers = #tpu.dot_dimension_numbers<[1], [0], [0], [1], [0, 0, 1, 1], [], []>} : vector<24x24xf32>, vector<24x512xf32>, vector<24x512xf32> -> vector<24x512xf32>
    %cst_6 = arith.constant 0.000000e+00 : f32
    %7 = vector.broadcast %cst_6 : f32 to vector<24x512xf32>
    %8 = arith.maximumf %6, %7 : vector<24x512xf32>
    %c64 = arith.constant 64 : index
    %c0_7 = arith.constant 0 : index
    %9 = vector.load %arg2[%c64, %c0_7] : memref<128x128xf32, #tpu.memory_space<vmem>>, vector<24x24xf32>
    %cst_8 = arith.constant dense<0.000000e+00> : vector<24x512xf32>
    %10 = tpu.matmul %9, %8, %cst_8 {dimension_numbers = #tpu.dot_dimension_numbers<[1], [0], [0], [1], [0, 0, 1, 1], [], []>} : vector<24x24xf32>, vector<24x512xf32>, vector<24x512xf32> -> vector<24x512xf32>
    %cst_9 = arith.constant 0.000000e+00 : f32
    %11 = vector.broadcast %cst_9 : f32 to vector<24x512xf32>
    %12 = arith.maximumf %10, %11 : vector<24x512xf32>
    %c96 = arith.constant 96 : index
    %c0_10 = arith.constant 0 : index
    %13 = vector.load %arg2[%c96, %c0_10] : memref<128x128xf32, #tpu.memory_space<vmem>>, vector<8x24xf32>
    %cst_11 = arith.constant dense<0.000000e+00> : vector<8x512xf32>
    %14 = tpu.matmul %13, %12, %cst_11 {dimension_numbers = #tpu.dot_dimension_numbers<[1], [0], [0], [1], [0, 0, 1, 1], [], []>} : vector<8x24xf32>, vector<24x512xf32>, vector<8x512xf32> -> vector<8x512xf32>
    %15 = vector.extract_strided_slice %14 {offsets = [0, 0], sizes = [4, 512], strides = [1, 1]} : vector<8x512xf32> to vector<4x512xf32>
    %cst_12 = arith.constant 0.000000e+00 : f32
    %16 = vector.broadcast %cst_12 : f32 to vector<4x512xf32>
    %17 = arith.maximumf %15, %16 : vector<4x512xf32>
    %18 = math.absf %15 : vector<4x512xf32>
    %cst_13 = arith.constant 0.000000e+00 : f32
    %19 = vector.broadcast %cst_13 : f32 to vector<4x512xf32>
    %20 = arith.subf %19, %18 : vector<4x512xf32>
    %21 = math.exp %20 : vector<4x512xf32>
    %22 = math.log1p %21 : vector<4x512xf32>
    %23 = arith.addf %17, %22 : vector<4x512xf32>
    %c0_14 = arith.constant 0 : index
    %c0_15 = arith.constant 0 : index
    %24 = vector.load %arg3[%c0_14, %c0_15] : memref<4x512xf32, #tpu.memory_space<vmem>>, vector<4x512xf32>
    tpu.vector_store %arg3[%c0_14, %c0_15], %23 {strides = array<i32>} : memref<4x512xf32, #tpu.memory_space<vmem>>, vector<4x512xf32>,
    return
  }
  func.func @transform_0(%arg0: i32) -> (i32, i32) {
    %c0_i32 = arith.constant 0 : i32
    %c0_i32_0 = arith.constant 0 : i32
    return %c0_i32, %arg0 : i32, i32
  }
  func.func @transform_1(%arg0: i32) -> (i32, i32) {
    %c0_i32 = arith.constant 0 : i32
    %c0_i32_0 = arith.constant 0 : i32
    %c0_i32_1 = arith.constant 0 : i32
    return %c0_i32, %c0_i32_0 : i32, i32
  }
  func.func @transform_2(%arg0: i32) -> (i32, i32) {
    %c0_i32 = arith.constant 0 : i32
    %c0_i32_0 = arith.constant 0 : i32
    return %c0_i32, %arg0 : i32, i32
  }
}

</mosaic_0001>

<llo_original>
// kernel: mlnet_forward.1
$region0: #{mlnet_forward.1}
  #allocation0 [shape = 'u32[]', space=smem, size = 0x4, offset = 0x4, fixed_abs, tag = 'smem constant byte address 0x4 - core index']
  #allocation1 [shape = 'u32[144,128]{1,0:T(1,128)}', space=vmem, size = 0x12000, scoped, tag = 'internal scratch']
  %s0 = inlined_call_operand.vmem [shape: f32[8,512], index: 0, kind: input, shape index: {}]
  %s1 = inlined_call_operand.vmem [shape: f32[128,128], index: 1, kind: input, shape index: {}]
  %s2 = inlined_call_operand.vmem [shape: f32[4,512], index: 2, kind: output, shape index: {}]
  %s3 = sld [smem:[#allocation0]]
  $region18: #{mlnet_forward.1} parent=0
    _
  %s5 = ssub.s32 1, %s3
  %s6 = scalar_select 0, %s5, %s3
  // Predicated region
  $region2: #{mlnet_forward.1} parent=0 // pred_check
    _
  $region3: #{mlnet_forward.1} parent=0 // pred_check_branch
    %8 = sbr.rel (0) target = $region5
  $region4: #{mlnet_forward.1} parent=0 // pred_region
    _
  $region5: #{mlnet_forward.1} parent=0 // pred_fallthru
    _
  // Predicated region
  $region6: #{mlnet_forward.1} parent=0 // pred_check
    _
  $region7: #{mlnet_forward.1} parent=0 // pred_check_branch
    %10 = sbr.rel (0) target = $region9
  $region8: #{mlnet_forward.1} parent=0 // pred_region
    _
  $region9: #{mlnet_forward.1} parent=0 // pred_fallthru
    _
  %v11 = vld [vmem:[%s0] sm:$0xff]
  %v12 = vld [vmem:[%s0 + $0x8] sm:$0xff]
  %v13 = vld [vmem:[%s0 + $0x10] sm:$0xff]
  %v14 = vld [vmem:[%s0 + $0x18] sm:$0xff]
  %v15 = vld [vmem:[%s1] sm:$0xff]
  %v16 = vld [vmem:[%s1 + $0x8] sm:$0xff]
  %v17 = vld [vmem:[%s1 + $0x10] sm:$0xff]
  %vm18 = vcmask 64512
  %v20 = vsel %vm18, %v15, 0
  %v23 = vsel %vm18, %v16, 0
  %v26 = vsel %vm18, %v17, 0
  %28 = vmatprep.subr.mxu0 %v12
  %29 = vmatpush1.msra.mxu0 %v11
  %30 = vmatprep.subr.mxu0 0.0
  %31 = vmatpush1.msra.mxu0 0.0
  %32 = vmatprep.subr.mxu0 0.0
  %33 = vmatpush1.msra.mxu0 0.0
  %34 = vmatprep.subr.mxu0 0.0
  %35 = vmatpush1.msra.mxu0 0.0
  %36 = vmatprep.subr.mxu0 0.0
  %37 = vmatpush1.msra.mxu0 0.0
  %38 = vmatprep.subr.mxu0 0.0
  %39 = vmatpush1.msra.mxu0 0.0
  %40 = vmatprep.subr.mxu0 0.0
  %41 = vmatpush1.msra.mxu0 0.0
  %42 = vmatprep.subr.mxu0 0.0
  %43 = vmatpush1.msra.mxu0 0.0
  %44 = vmatprep.subr.mxu0 0.0
  %45 = vmatpush1.msra.mxu0 0.0
  %46 = vmatprep.subr.mxu0 0.0
  %47 = vmatpush1.msra.mxu0 0.0
  %48 = vmatprep.subr.mxu0 0.0
  %49 = vmatpush1.msra.mxu0 0.0
  %50 = vmatprep.subr.mxu0 0.0
  %51 = vmatpush1.msra.mxu0 0.0
  %52 = vmatprep.subr.mxu0 0.0
  %53 = vmatpush1.msra.mxu0 0.0
  %54 = vmatprep.subr.mxu0 0.0
  %55 = vmatpush1.msra.mxu0 0.0
  %56 = vmatprep.subr.mxu0 0.0
  %57 = vmatpush1.msra.mxu0 0.0
  %58 = vmatprep.subr.mxu0 0.0
  %59 = vmatpush1.msra.mxu0 0.0
  %60 = vmatprep.subr.mxu0 0.0
  %61 = vmatpush1.msra.mxu0 0.0
  %62 = vmatprep.subr.mxu0 0.0
  %63 = vmatpush1.msra.mxu0 0.0
  %64 = vmatprep.subr.mxu0 0.0
  %65 = vmatpush1.msra.mxu0 0.0
  %66 = vmatprep.subr.mxu0 0.0
  %67 = vmatpush1.msra.mxu0 0.0
  %68 = vmatprep.subr.mxu0 0.0
  %69 = vmatpush1.msra.mxu0 0.0
  %70 = vmatprep.subr.mxu0 0.0
  %71 = vmatpush1.msra.mxu0 0.0
  %72 = vmatprep.subr.mxu0 0.0
  %73 = vmatpush1.msra.mxu0 0.0
  %74 = vmatprep.subr.mxu0 0.0
  %75 = vmatpush1.msra.mxu0 0.0
  %76 = vmatprep.subr.mxu0 0.0
  %77 = vmatpush1.msra.mxu0 0.0
  %78 = vmatprep.subr.mxu0 0.0
  %79 = vmatpush1.msra.mxu0 0.0
  %80 = vmatprep.subr.mxu0 0.0
  %81 = vmatpush1.msra.mxu0 0.0
  %82 = vmatprep.subr.mxu0 0.0
  %83 = vmatpush1.msra.mxu0 0.0
  %84 = vmatprep.subr.mxu0 0.0
  %85 = vmatpush1.msra.mxu0 0.0
  %86 = vmatprep.subr.mxu0 0.0
  %87 = vmatpush1.msra.mxu0 0.0
  %88 = vmatprep.subr.mxu0 0.0
  %89 = vmatpush1.msra.mxu0 0.0
  %90 = vmatprep.subr.mxu0 0.0
  %91 = vmatpush1.msra.mxu0 0.0
  %92 = vmatprep.mubr.f32.mxu0 0.0
  %93 = vmatmul.mubr.f32.gmra.mrb[0].mxu0 %v20
  %v94 = vpop.f32.mrb[0].mxu0
  %v95 = vadd.f32 0.0, %v94
  %v96 = vpop.f32.mrb[0].mxu0
  %v97 = vadd.f32 0.0, %v96
  %98 = vmatprep.mubr.f32.mxu0 0.0
  %99 = vmatmul.mubr.f32.gmra.mrb[0].mxu0 %v23
  %v100 = vpop.f32.mrb[0].mxu0
  %v101 = vadd.f32 0.0, %v100
  %v102 = vpop.f32.mrb[0].mxu0
  %v103 = vadd.f32 0.0, %v102
  %104 = vmatprep.mubr.f32.mxu0 0.0
  %105 = vmatmul.mubr.f32.gmra.mrb[0].mxu0 %v26
  %v106 = vpop.f32.mrb[0].mxu0
  %v107 = vadd.f32 0.0, %v106
  %v108 = vpop.f32.mrb[0].mxu0
  %v109 = vadd.f32 0.0, %v108
  %110 = vdwg.mxu0
  %111 = vmatprep.subr.mxu0 %v14
  %112 = vmatpush1.msra.mxu0 %v13
  %113 = vmatprep.subr.mxu0 0.0
  %114 = vmatpush1.msra.mxu0 0.0
  %115 = vmatprep.subr.mxu0 0.0
  %116 = vmatpush1.msra.mxu0 0.0
  %117 = vmatprep.subr.mxu0 0.0
  %118 = vmatpush1.msra.mxu0 0.0
  %119 = vmatprep.subr.mxu0 0.0
  %120 = vmatpush1.msra.mxu0 0.0
  %121 = vmatprep.subr.mxu0 0.0
  %122 = vmatpush1.msra.mxu0 0.0
  %123 = vmatprep.subr.mxu0 0.0
  %124 = vmatpush1.msra.mxu0 0.0
  %125 = vmatprep.subr.mxu0 0.0
  %126 = vmatpush1.msra.mxu0 0.0
  %127 = vmatprep.subr.mxu0 0.0
  %128 = vmatpush1.msra.mxu0 0.0
  %129 = vmatprep.subr.mxu0 0.0
  %130 = vmatpush1.msra.mxu0 0.0
  %131 = vmatprep.subr.mxu0 0.0
  %132 = vmatpush1.msra.mxu0 0.0
  %133 = vmatprep.subr.mxu0 0.0
  %134 = vmatpush1.msra.mxu0 0.0
  %135 = vmatprep.subr.mxu0 0.0
  %136 = vmatpush1.msra.mxu0 0.0
  %137 = vmatprep.subr.mxu0 0.0
  %138 = vmatpush1.msra.mxu0 0.0
  %139 = vmatprep.subr.mxu0 0.0
  %140 = vmatpush1.msra.mxu0 0.0
  %141 = vmatprep.subr.mxu0 0.0
  %142 = vmatpush1.msra.mxu0 0.0
  %143 = vmatprep.subr.mxu0 0.0
  %144 = vmatpush1.msra.mxu0 0.0
  %145 = vmatprep.subr.mxu0 0.0
  %146 = vmatpush1.msra.mxu0 0.0
  %147 = vmatprep.subr.mxu0 0.0
  %148 = vmatpush1.msra.mxu0 0.0
  %149 = vmatprep.subr.mxu0 0.0
  %150 = vmatpush1.msra.mxu0 0.0
  %151 = vmatprep.subr.mxu0 0.0
  %152 = vmatpush1.msra.mxu0 0.0
  %153 = vmatprep.subr.mxu0 0.0
  %154 = vmatpush1.msra.mxu0 0.0
  %155 = vmatprep.subr.mxu0 0.0
  %156 = vmatpush1.msra.mxu0 0.0
  %157 = vmatprep.subr.mxu0 0.0
  %158 = vmatpush1.msra.mxu0 0.0
  %159 = vmatprep.subr.mxu0 0.0
  %160 = vmatpush1.msra.mxu0 0.0
  %161 = vmatprep.subr.mxu0 0.0
  %162 = vmatpush1.msra.mxu0 0.0
  %163 = vmatprep.subr.mxu0 0.0
  %164 = vmatpush1.msra.mxu0 0.0
  %165 = vmatprep.subr.mxu0 0.0
  %166 = vmatpush1.msra.mxu0 0.0
  %167 = vmatprep.subr.mxu0 0.0
  %168 = vmatpush1.msra.mxu0 0.0
  %169 = vmatprep.subr.mxu0 0.0
  %170 = vmatpush1.msra.mxu0 0.0
  %171 = vmatprep.subr.mxu0 0.0
  %172 = vmatpush1.msra.mxu0 0.0
  %173 = vmatprep.subr.mxu0 0.0
  %174 = vmatpush1.msra.mxu0 0.0
  %175 = vmatprep.mubr.f32.mxu0 0.0
  %176 = vmatmul.mubr.f32.gmra.mrb[0].mxu0 %v20
  %v177 = vpop.f32.mrb[0].mxu0
  %v178 = vadd.f32 0.0, %v177
  %v179 = vpop.f32.mrb[0].mxu0
  %v180 = vadd.f32 0.0, %v179
  %181 = vmatprep.mubr.f32.mxu0 0.0
  %182 = vmatmul.mubr.f32.gmra.mrb[0].mxu0 %v23
  %v183 = vpop.f32.mrb[0].mxu0
  %v184 = vadd.f32 0.0, %v183
  %v185 = vpop.f32.mrb[0].mxu0
  %v186 = vadd.f32 0.0, %v185
  %187 = vmatprep.mubr.f32.mxu0 0.0
  %188 = vmatmul.mubr.f32.gmra.mrb[0].mxu0 %v26
  %v189 = vpop.f32.mrb[0].mxu0
  %v190 = vadd.f32 0.0, %v189
  %v191 = vpop.f32.mrb[0].mxu0
  %v192 = vadd.f32 0.0, %v191
  %193 = vdwg.mxu0
  %v194 = vmax.f32 %v95, 0.0
  %v195 = vmax.f32 %v97, 0.0
  %v196 = vmax.f32 %v178, 0.0
  %v197 = vmax.f32 %v180, 0.0
  %v198 = vmax.f32 %v101, 0.0
  %v199 = vmax.f32 %v103, 0.0
  %v200 = vmax.f32 %v184, 0.0
  %v201 = vmax.f32 %v186, 0.0
  %v202 = vmax.f32 %v107, 0.0
  %v203 = vmax.f32 %v109, 0.0
  %v204 = vmax.f32 %v190, 0.0
  %v205 = vmax.f32 %v192, 0.0
  %v206 = vld [vmem:[%s1 + $0x20] sm:$0xff]
  %v207 = vld [vmem:[%s1 + $0x28] sm:$0xff]
  %v208 = vld [vmem:[%s1 + $0x30] sm:$0xff]
  %vm209 = vcmask 195584
  %v211 = vsel %vm209, %v206, 0
  %v214 = vsel %vm209, %v207, 0
  %v217 = vsel %vm209, %v208, 0
  %219 = vmatprep.subr.mxu0 %v195
  %220 = vmatpush1.msra.mxu0 %v194
  %221 = vmatprep.subr.mxu0 %v199
  %222 = vmatpush1.msra.mxu0 %v198
  %223 = vmatprep.subr.mxu0 %v203
  %224 = vmatpush1.msra.mxu0 %v202
  %225 = vmatprep.subr.mxu0 0.0
  %226 = vmatpush1.msra.mxu0 0.0
  %227 = vmatprep.subr.mxu0 0.0
  %228 = vmatpush1.msra.mxu0 0.0
  %229 = vmatprep.subr.mxu0 0.0
  %230 = vmatpush1.msra.mxu0 0.0
  %231 = vmatprep.subr.mxu0 0.0
  %232 = vmatpush1.msra.mxu0 0.0
  %233 = vmatprep.subr.mxu0 0.0
  %234 = vmatpush1.msra.mxu0 0.0
  %235 = vmatprep.subr.mxu0 0.0
  %236 = vmatpush1.msra.mxu0 0.0
  %237 = vmatprep.subr.mxu0 0.0
  %238 = vmatpush1.msra.mxu0 0.0
  %239 = vmatprep.subr.mxu0 0.0
  %240 = vmatpush1.msra.mxu0 0.0
  %241 = vmatprep.subr.mxu0 0.0
  %242 = vmatpush1.msra.mxu0 0.0
  %243 = vmatprep.subr.mxu0 0.0
  %244 = vmatpush1.msra.mxu0 0.0
  %245 = vmatprep.subr.mxu0 0.0
  %246 = vmatpush1.msra.mxu0 0.0
  %247 = vmatprep.subr.mxu0 0.0
  %248 = vmatpush1.msra.mxu0 0.0
  %249 = vmatprep.subr.mxu0 0.0
  %250 = vmatpush1.msra.mxu0 0.0
  %251 = vmatprep.subr.mxu0 0.0
  %252 = vmatpush1.msra.mxu0 0.0
  %253 = vmatprep.subr.mxu0 0.0
  %254 = vmatpush1.msra.mxu0 0.0
  %255 = vmatprep.subr.mxu0 0.0
  %256 = vmatpush1.msra.mxu0 0.0
  %257 = vmatprep.subr.mxu0 0.0
  %258 = vmatpush1.msra.mxu0 0.0
  %259 = vmatprep.subr.mxu0 0.0
  %260 = vmatpush1.msra.mxu0 0.0
  %261 = vmatprep.subr.mxu0 0.0
  %262 = vmatpush1.msra.mxu0 0.0
  %263 = vmatprep.subr.mxu0 0.0
  %264 = vmatpush1.msra.mxu0 0.0
  %265 = vmatprep.subr.mxu0 0.0
  %266 = vmatpush1.msra.mxu0 0.0
  %267 = vmatprep.subr.mxu0 0.0
  %268 = vmatpush1.msra.mxu0 0.0
  %269 = vmatprep.subr.mxu0 0.0
  %270 = vmatpush1.msra.mxu0 0.0
  %271 = vmatprep.subr.mxu0 0.0
  %272 = vmatpush1.msra.mxu0 0.0
  %273 = vmatprep.subr.mxu0 0.0
  %274 = vmatpush1.msra.mxu0 0.0
  %275 = vmatprep.subr.mxu0 0.0
  %276 = vmatpush1.msra.mxu0 0.0
  %277 = vmatprep.subr.mxu0 0.0
  %278 = vmatpush1.msra.mxu0 0.0
  %279 = vmatprep.subr.mxu0 0.0
  %280 = vmatpush1.msra.mxu0 0.0
  %281 = vmatprep.subr.mxu0 0.0
  %282 = vmatpush1.msra.mxu0 0.0
  %283 = vmatprep.mubr.f32.mxu0 0.0
  %284 = vmatmul.mubr.f32.gmra.mrb[0].mxu0 %v211
  %v285 = vpop.f32.mrb[0].mxu0
  %v286 = vadd.f32 0.0, %v285
  %v287 = vpop.f32.mrb[0].mxu0
  %v288 = vadd.f32 0.0, %v287
  %289 = vmatprep.mubr.f32.mxu0 0.0
  %290 = vmatmul.mubr.f32.gmra.mrb[0].mxu0 %v214
  %v291 = vpop.f32.mrb[0].mxu0
  %v292 = vadd.f32 0.0, %v291
  %v293 = vpop.f32.mrb[0].mxu0
  %v294 = vadd.f32 0.0, %v293
  %295 = vmatprep.mubr.f32.mxu0 0.0
  %296 = vmatmul.mubr.f32.gmra.mrb[0].mxu0 %v217
  %v297 = vpop.f32.mrb[0].mxu0
  %v298 = vadd.f32 0.0, %v297
  %v299 = vpop.f32.mrb[0].mxu0
  %v300 = vadd.f32 0.0, %v299
  %301 = vdwg.mxu0
  %302 = vmatprep.subr.mxu0 %v197
  %303 = vmatpush1.msra.mxu0 %v196
  %304 = vmatprep.subr.mxu0 %v201
  %305 = vmatpush1.msra.mxu0 %v200
  %306 = vmatprep.subr.mxu0 %v205
  %307 = vmatpush1.msra.mxu0 %v204
  %308 = vmatprep.subr.mxu0 0.0
  %309 = vmatpush1.msra.mxu0 0.0
  %310 = vmatprep.subr.mxu0 0.0
  %311 = vmatpush1.msra.mxu0 0.0
  %312 = vmatprep.subr.mxu0 0.0
  %313 = vmatpush1.msra.mxu0 0.0
  %314 = vmatprep.subr.mxu0 0.0
  %315 = vmatpush1.msra.mxu0 0.0
  %316 = vmatprep.subr.mxu0 0.0
  %317 = vmatpush1.msra.mxu0 0.0
  %318 = vmatprep.subr.mxu0 0.0
  %319 = vmatpush1.msra.mxu0 0.0
  %320 = vmatprep.subr.mxu0 0.0
  %321 = vmatpush1.msra.mxu0 0.0
  %322 = vmatprep.subr.mxu0 0.0
  %323 = vmatpush1.msra.mxu0 0.0
  %324 = vmatprep.subr.mxu0 0.0
  %325 = vmatpush1.msra.mxu0 0.0
  %326 = vmatprep.subr.mxu0 0.0
  %327 = vmatpush1.msra.mxu0 0.0
  %328 = vmatprep.subr.mxu0 0.0
  %329 = vmatpush1.msra.mxu0 0.0
  %330 = vmatprep.subr.mxu0 0.0
  %331 = vmatpush1.msra.mxu0 0.0
  %332 = vmatprep.subr.mxu0 0.0
  %333 = vmatpush1.msra.mxu0 0.0
  %334 = vmatprep.subr.mxu0 0.0
  %335 = vmatpush1.msra.mxu0 0.0
  %336 = vmatprep.subr.mxu0 0.0
  %337 = vmatpush1.msra.mxu0 0.0
  %338 = vmatprep.subr.mxu0 0.0
  %339 = vmatpush1.msra.mxu0 0.0
  %340 = vmatprep.subr.mxu0 0.0
  %341 = vmatpush1.msra.mxu0 0.0
  %342 = vmatprep.subr.mxu0 0.0
  %343 = vmatpush1.msra.mxu0 0.0
  %344 = vmatprep.subr.mxu0 0.0
  %345 = vmatpush1.msra.mxu0 0.0
  %346 = vmatprep.subr.mxu0 0.0
  %347 = vmatpush1.msra.mxu0 0.0
  %348 = vmatprep.subr.mxu0 0.0
  %349 = vmatpush1.msra.mxu0 0.0
  %350 = vmatprep.subr.mxu0 0.0
  %351 = vmatpush1.msra.mxu0 0.0
  %352 = vmatprep.subr.mxu0 0.0
  %353 = vmatpush1.msra.mxu0 0.0
  %354 = vmatprep.subr.mxu0 0.0
  %355 = vmatpush1.msra.mxu0 0.0
  %356 = vmatprep.subr.mxu0 0.0
  %357 = vmatpush1.msra.mxu0 0.0
  %358 = vmatprep.subr.mxu0 0.0
  %359 = vmatpush1.msra.mxu0 0.0
  %360 = vmatprep.subr.mxu0 0.0
  %361 = vmatpush1.msra.mxu0 0.0
  %362 = vmatprep.subr.mxu0 0.0
  %363 = vmatpush1.msra.mxu0 0.0
  %364 = vmatprep.subr.mxu0 0.0
  %365 = vmatpush1.msra.mxu0 0.0
  %366 = vmatprep.mubr.f32.mxu0 0.0
  %367 = vmatmul.mubr.f32.gmra.mrb[0].mxu0 %v211
  %v368 = vpop.f32.mrb[0].mxu0
  %v369 = vadd.f32 0.0, %v368
  %v370 = vpop.f32.mrb[0].mxu0
  %v371 = vadd.f32 0.0, %v370
  %372 = vmatprep.mubr.f32.mxu0 0.0
  %373 = vmatmul.mubr.f32.gmra.mrb[0].mxu0 %v214
  %v374 = vpop.f32.mrb[0].mxu0
  %v375 = vadd.f32 0.0, %v374
  %v376 = vpop.f32.mrb[0].mxu0
  %v377 = vadd.f32 0.0, %v376
  %378 = vmatprep.mubr.f32.mxu0 0.0
  %379 = vmatmul.mubr.f32.gmra.mrb[0].mxu0 %v217
  %v380 = vpop.f32.mrb[0].mxu0
  %v381 = vadd.f32 0.0, %v380
  %v382 = vpop.f32.mrb[0].mxu0
  %v383 = vadd.f32 0.0, %v382
  %384 = vdwg.mxu0
  %v385 = vmax.f32 %v286, 0.0
  %v386 = vmax.f32 %v288, 0.0
  %v387 = vmax.f32 %v369, 0.0
  %v388 = vmax.f32 %v371, 0.0
  %v389 = vmax.f32 %v292, 0.0
  %v390 = vmax.f32 %v294, 0.0
  %v391 = vmax.f32 %v375, 0.0
  %v392 = vmax.f32 %v377, 0.0
  %v393 = vmax.f32 %v298, 0.0
  %v394 = vmax.f32 %v300, 0.0
  %v395 = vmax.f32 %v381, 0.0
  %v396 = vmax.f32 %v383, 0.0
  %v397 = vld [vmem:[%s1 + $0x40] sm:$0xff]
  %v398 = vld [vmem:[%s1 + $0x48] sm:$0xff]
  %v399 = vld [vmem:[%s1 + $0x50] sm:$0xff]
  %v401 = vsel %vm209, %v397, 0
  %v404 = vsel %vm209, %v398, 0
  %v407 = vsel %vm209, %v399, 0
  %409 = vmatprep.subr.mxu0 %v386
  %410 = vmatpush1.msra.mxu0 %v385
  %411 = vmatprep.subr.mxu0 %v390
  %412 = vmatpush1.msra.mxu0 %v389
  %413 = vmatprep.subr.mxu0 %v394
  %414 = vmatpush1.msra.mxu0 %v393
  %415 = vmatprep.subr.mxu0 0.0
  %416 = vmatpush1.msra.mxu0 0.0
  %417 = vmatprep.subr.mxu0 0.0
  %418 = vmatpush1.msra.mxu0 0.0
  %419 = vmatprep.subr.mxu0 0.0
  %420 = vmatpush1.msra.mxu0 0.0
  %421 = vmatprep.subr.mxu0 0.0
  %422 = vmatpush1.msra.mxu0 0.0
  %423 = vmatprep.subr.mxu0 0.0
  %424 = vmatpush1.msra.mxu0 0.0
  %425 = vmatprep.subr.mxu0 0.0
  %426 = vmatpush1.msra.mxu0 0.0
  %427 = vmatprep.subr.mxu0 0.0
  %428 = vmatpush1.msra.mxu0 0.0
  %429 = vmatprep.subr.mxu0 0.0
  %430 = vmatpush1.msra.mxu0 0.0
  %431 = vmatprep.subr.mxu0 0.0
  %432 = vmatpush1.msra.mxu0 0.0
  %433 = vmatprep.subr.mxu0 0.0
  %434 = vmatpush1.msra.mxu0 0.0
  %435 = vmatprep.subr.mxu0 0.0
  %436 = vmatpush1.msra.mxu0 0.0
  %437 = vmatprep.subr.mxu0 0.0
  %438 = vmatpush1.msra.mxu0 0.0
  %439 = vmatprep.subr.mxu0 0.0
  %440 = vmatpush1.msra.mxu0 0.0
  %441 = vmatprep.subr.mxu0 0.0
  %442 = vmatpush1.msra.mxu0 0.0
  %443 = vmatprep.subr.mxu0 0.0
  %444 = vmatpush1.msra.mxu0 0.0
  %445 = vmatprep.subr.mxu0 0.0
  %446 = vmatpush1.msra.mxu0 0.0
  %447 = vmatprep.subr.mxu0 0.0
  %448 = vmatpush1.msra.mxu0 0.0
  %449 = vmatprep.subr.mxu0 0.0
  %450 = vmatpush1.msra.mxu0 0.0
  %451 = vmatprep.subr.mxu0 0.0
  %452 = vmatpush1.msra.mxu0 0.0
  %453 = vmatprep.subr.mxu0 0.0
  %454 = vmatpush1.msra.mxu0 0.0
  %455 = vmatprep.subr.mxu0 0.0
  %456 = vmatpush1.msra.mxu0 0.0
  %457 = vmatprep.subr.mxu0 0.0
  %458 = vmatpush1.msra.mxu0 0.0
  %459 = vmatprep.subr.mxu0 0.0
  %460 = vmatpush1.msra.mxu0 0.0
  %461 = vmatprep.subr.mxu0 0.0
  %462 = vmatpush1.msra.mxu0 0.0
  %463 = vmatprep.subr.mxu0 0.0
  %464 = vmatpush1.msra.mxu0 0.0
  %465 = vmatprep.subr.mxu0 0.0
  %466 = vmatpush1.msra.mxu0 0.0
  %467 = vmatprep.subr.mxu0 0.0
  %468 = vmatpush1.msra.mxu0 0.0
  %469 = vmatprep.subr.mxu0 0.0
  %470 = vmatpush1.msra.mxu0 0.0
  %471 = vmatprep.subr.mxu0 0.0
  %472 = vmatpush1.msra.mxu0 0.0
  %473 = vmatprep.mubr.f32.mxu0 0.0
  %474 = vmatmul.mubr.f32.gmra.mrb[0].mxu0 %v401
  %v475 = vpop.f32.mrb[0].mxu0
  %v476 = vadd.f32 0.0, %v475
  %v477 = vpop.f32.mrb[0].mxu0
  %v478 = vadd.f32 0.0, %v477
  %479 = vmatprep.mubr.f32.mxu0 0.0
  %480 = vmatmul.mubr.f32.gmra.mrb[0].mxu0 %v404
  %v481 = vpop.f32.mrb[0].mxu0
  %v482 = vadd.f32 0.0, %v481
  %v483 = vpop.f32.mrb[0].mxu0
  %v484 = vadd.f32 0.0, %v483
  %485 = vmatprep.mubr.f32.mxu0 0.0
  %486 = vmatmul.mubr.f32.gmra.mrb[0].mxu0 %v407
  %v487 = vpop.f32.mrb[0].mxu0
  %v488 = vadd.f32 0.0, %v487
  %v489 = vpop.f32.mrb[0].mxu0
  %v490 = vadd.f32 0.0, %v489
  %491 = vdwg.mxu0
  %492 = vmatprep.subr.mxu0 %v388
  %493 = vmatpush1.msra.mxu0 %v387
  %494 = vmatprep.subr.mxu0 %v392
  %495 = vmatpush1.msra.mxu0 %v391
  %496 = vmatprep.subr.mxu0 %v396
  %497 = vmatpush1.msra.mxu0 %v395
  %498 = vmatprep.subr.mxu0 0.0
  %499 = vmatpush1.msra.mxu0 0.0
  %500 = vmatprep.subr.mxu0 0.0
  %501 = vmatpush1.msra.mxu0 0.0
  %502 = vmatprep.subr.mxu0 0.0
  %503 = vmatpush1.msra.mxu0 0.0
  %504 = vmatprep.subr.mxu0 0.0
  %505 = vmatpush1.msra.mxu0 0.0
  %506 = vmatprep.subr.mxu0 0.0
  %507 = vmatpush1.msra.mxu0 0.0
  %508 = vmatprep.subr.mxu0 0.0
  %509 = vmatpush1.msra.mxu0 0.0
  %510 = vmatprep.subr.mxu0 0.0
  %511 = vmatpush1.msra.mxu0 0.0
  %512 = vmatprep.subr.mxu0 0.0
  %513 = vmatpush1.msra.mxu0 0.0
  %514 = vmatprep.subr.mxu0 0.0
  %515 = vmatpush1.msra.mxu0 0.0
  %516 = vmatprep.subr.mxu0 0.0
  %517 = vmatpush1.msra.mxu0 0.0
  %518 = vmatprep.subr.mxu0 0.0
  %519 = vmatpush1.msra.mxu0 0.0
  %520 = vmatprep.subr.mxu0 0.0
  %521 = vmatpush1.msra.mxu0 0.0
  %522 = vmatprep.subr.mxu0 0.0
  %523 = vmatpush1.msra.mxu0 0.0
  %524 = vmatprep.subr.mxu0 0.0
  %525 = vmatpush1.msra.mxu0 0.0
  %526 = vmatprep.subr.mxu0 0.0
  %527 = vmatpush1.msra.mxu0 0.0
  %528 = vmatprep.subr.mxu0 0.0
  %529 = vmatpush1.msra.mxu0 0.0
  %530 = vmatprep.subr.mxu0 0.0
  %531 = vmatpush1.msra.mxu0 0.0
  %532 = vmatprep.subr.mxu0 0.0
  %533 = vmatpush1.msra.mxu0 0.0
  %534 = vmatprep.subr.mxu0 0.0
  %535 = vmatpush1.msra.mxu0 0.0
  %536 = vmatprep.subr.mxu0 0.0
  %537 = vmatpush1.msra.mxu0 0.0
  %538 = vmatprep.subr.mxu0 0.0
  %539 = vmatpush1.msra.mxu0 0.0
  %540 = vmatprep.subr.mxu0 0.0
  %541 = vmatpush1.msra.mxu0 0.0
  %542 = vmatprep.subr.mxu0 0.0
  %543 = vmatpush1.msra.mxu0 0.0
  %544 = vmatprep.subr.mxu0 0.0
  %545 = vmatpush1.msra.mxu0 0.0
  %546 = vmatprep.subr.mxu0 0.0
  %547 = vmatpush1.msra.mxu0 0.0
  %548 = vmatprep.subr.mxu0 0.0
  %549 = vmatpush1.msra.mxu0 0.0
  %550 = vmatprep.subr.mxu0 0.0
  %551 = vmatpush1.msra.mxu0 0.0
  %552 = vmatprep.subr.mxu0 0.0
  %553 = vmatpush1.msra.mxu0 0.0
  %554 = vmatprep.subr.mxu0 0.0
  %555 = vmatpush1.msra.mxu0 0.0
  %556 = vmatprep.mubr.f32.mxu0 0.0
  %557 = vmatmul.mubr.f32.gmra.mrb[0].mxu0 %v401
  %v558 = vpop.f32.mrb[0].mxu0
  %v559 = vadd.f32 0.0, %v558
  %v560 = vpop.f32.mrb[0].mxu0
  %v561 = vadd.f32 0.0, %v560
  %562 = vmatprep.mubr.f32.mxu0 0.0
  %563 = vmatmul.mubr.f32.gmra.mrb[0].mxu0 %v404
  %v564 = vpop.f32.mrb[0].mxu0
  %v565 = vadd.f32 0.0, %v564
  %v566 = vpop.f32.mrb[0].mxu0
  %v567 = vadd.f32 0.0, %v566
  %568 = vmatprep.mubr.f32.mxu0 0.0
  %569 = vmatmul.mubr.f32.gmra.mrb[0].mxu0 %v407
  %v570 = vpop.f32.mrb[0].mxu0
  %v571 = vadd.f32 0.0, %v570
  %v572 = vpop.f32.mrb[0].mxu0
  %v573 = vadd.f32 0.0, %v572
  %574 = vdwg.mxu0
  %v575 = vmax.f32 %v476, 0.0
  %v576 = vmax.f32 %v478, 0.0
  %v577 = vmax.f32 %v559, 0.0
  %v578 = vmax.f32 %v561, 0.0
  %v579 = vmax.f32 %v482, 0.0
  %v580 = vmax.f32 %v484, 0.0
  %v581 = vmax.f32 %v565, 0.0
  %v582 = vmax.f32 %v567, 0.0
  %v583 = vmax.f32 %v488, 0.0
  %v584 = vmax.f32 %v490, 0.0
  %v585 = vmax.f32 %v571, 0.0
  %v586 = vmax.f32 %v573, 0.0
  %v587 = vld [vmem:[%s1 + $0x60] sm:$0xff]
  %v589 = vsel %vm209, %v587, 0
  %591 = vmatprep.subr.mxu0 %v576
  %592 = vmatpush1.msra.mxu0 %v575
  %593 = vmatprep.subr.mxu0 %v580
  %594 = vmatpush1.msra.mxu0 %v579
  %595 = vmatprep.subr.mxu0 %v584
  %596 = vmatpush1.msra.mxu0 %v583
  %597 = vmatprep.subr.mxu0 0.0
  %598 = vmatpush1.msra.mxu0 0.0
  %599 = vmatprep.subr.mxu0 0.0
  %600 = vmatpush1.msra.mxu0 0.0
  %601 = vmatprep.subr.mxu0 0.0
  %602 = vmatpush1.msra.mxu0 0.0
  %603 = vmatprep.subr.mxu0 0.0
  %604 = vmatpush1.msra.mxu0 0.0
  %605 = vmatprep.subr.mxu0 0.0
  %606 = vmatpush1.msra.mxu0 0.0
  %607 = vmatprep.subr.mxu0 0.0
  %608 = vmatpush1.msra.mxu0 0.0
  %609 = vmatprep.subr.mxu0 0.0
  %610 = vmatpush1.msra.mxu0 0.0
  %611 = vmatprep.subr.mxu0 0.0
  %612 = vmatpush1.msra.mxu0 0.0
  %613 = vmatprep.subr.mxu0 0.0
  %614 = vmatpush1.msra.mxu0 0.0
  %615 = vmatprep.subr.mxu0 0.0
  %616 = vmatpush1.msra.mxu0 0.0
  %617 = vmatprep.subr.mxu0 0.0
  %618 = vmatpush1.msra.mxu0 0.0
  %619 = vmatprep.subr.mxu0 0.0
  %620 = vmatpush1.msra.mxu0 0.0
  %621 = vmatprep.subr.mxu0 0.0
  %622 = vmatpush1.msra.mxu0 0.0
  %623 = vmatprep.subr.mxu0 0.0
  %624 = vmatpush1.msra.mxu0 0.0
  %625 = vmatprep.subr.mxu0 0.0
  %626 = vmatpush1.msra.mxu0 0.0
  %627 = vmatprep.subr.mxu0 0.0
  %628 = vmatpush1.msra.mxu0 0.0
  %629 = vmatprep.subr.mxu0 0.0
  %630 = vmatpush1.msra.mxu0 0.0
  %631 = vmatprep.subr.mxu0 0.0
  %632 = vmatpush1.msra.mxu0 0.0
  %633 = vmatprep.subr.mxu0 0.0
  %634 = vmatpush1.msra.mxu0 0.0
  %635 = vmatprep.subr.mxu0 0.0
  %636 = vmatpush1.msra.mxu0 0.0
  %637 = vmatprep.subr.mxu0 0.0
  %638 = vmatpush1.msra.mxu0 0.0
  %639 = vmatprep.subr.mxu0 0.0
  %640 = vmatpush1.msra.mxu0 0.0
  %641 = vmatprep.subr.mxu0 0.0
  %642 = vmatpush1.msra.mxu0 0.0
  %643 = vmatprep.subr.mxu0 0.0
  %644 = vmatpush1.msra.mxu0 0.0
  %645 = vmatprep.subr.mxu0 0.0
  %646 = vmatpush1.msra.mxu0 0.0
  %647 = vmatprep.subr.mxu0 0.0
  %648 = vmatpush1.msra.mxu0 0.0
  %649 = vmatprep.subr.mxu0 0.0
  %650 = vmatpush1.msra.mxu0 0.0
  %651 = vmatprep.subr.mxu0 0.0
  %652 = vmatpush1.msra.mxu0 0.0
  %653 = vmatprep.subr.mxu0 0.0
  %654 = vmatpush1.msra.mxu0 0.0
  %655 = vmatprep.mubr.f32.mxu0 0.0
  %656 = vmatmul.mubr.f32.gmra.mrb[0].mxu0 %v589
  %v657 = vpop.f32.mrb[0].mxu0
  %v658 = vadd.f32 0.0, %v657
  %v659 = vpop.f32.mrb[0].mxu0
  %v660 = vadd.f32 0.0, %v659
  %661 = vdwg.mxu0
  %662 = vmatprep.subr.mxu0 %v578
  %663 = vmatpush1.msra.mxu0 %v577
  %664 = vmatprep.subr.mxu0 %v582
  %665 = vmatpush1.msra.mxu0 %v581
  %666 = vmatprep.subr.mxu0 %v586
  %667 = vmatpush1.msra.mxu0 %v585
  %668 = vmatprep.subr.mxu0 0.0
  %669 = vmatpush1.msra.mxu0 0.0
  %670 = vmatprep.subr.mxu0 0.0
  %671 = vmatpush1.msra.mxu0 0.0
  %672 = vmatprep.subr.mxu0 0.0
  %673 = vmatpush1.msra.mxu0 0.0
  %674 = vmatprep.subr.mxu0 0.0
  %675 = vmatpush1.msra.mxu0 0.0
  %676 = vmatprep.subr.mxu0 0.0
  %677 = vmatpush1.msra.mxu0 0.0
  %678 = vmatprep.subr.mxu0 0.0
  %679 = vmatpush1.msra.mxu0 0.0
  %680 = vmatprep.subr.mxu0 0.0
  %681 = vmatpush1.msra.mxu0 0.0
  %682 = vmatprep.subr.mxu0 0.0
  %683 = vmatpush1.msra.mxu0 0.0
  %684 = vmatprep.subr.mxu0 0.0
  %685 = vmatpush1.msra.mxu0 0.0
  %686 = vmatprep.subr.mxu0 0.0
  %687 = vmatpush1.msra.mxu0 0.0
  %688 = vmatprep.subr.mxu0 0.0
  %689 = vmatpush1.msra.mxu0 0.0
  %690 = vmatprep.subr.mxu0 0.0
  %691 = vmatpush1.msra.mxu0 0.0
  %692 = vmatprep.subr.mxu0 0.0
  %693 = vmatpush1.msra.mxu0 0.0
  %694 = vmatprep.subr.mxu0 0.0
  %695 = vmatpush1.msra.mxu0 0.0
  %696 = vmatprep.subr.mxu0 0.0
  %697 = vmatpush1.msra.mxu0 0.0
  %698 = vmatprep.subr.mxu0 0.0
  %699 = vmatpush1.msra.mxu0 0.0
  %700 = vmatprep.subr.mxu0 0.0
  %701 = vmatpush1.msra.mxu0 0.0
  %702 = vmatprep.subr.mxu0 0.0
  %703 = vmatpush1.msra.mxu0 0.0
  %704 = vmatprep.subr.mxu0 0.0
  %705 = vmatpush1.msra.mxu0 0.0
  %706 = vmatprep.subr.mxu0 0.0
  %707 = vmatpush1.msra.mxu0 0.0
  %708 = vmatprep.subr.mxu0 0.0
  %709 = vmatpush1.msra.mxu0 0.0
  %710 = vmatprep.subr.mxu0 0.0
  %711 = vmatpush1.msra.mxu0 0.0
  %712 = vmatprep.subr.mxu0 0.0
  %713 = vmatpush1.msra.mxu0 0.0
  %714 = vmatprep.subr.mxu0 0.0
  %715 = vmatpush1.msra.mxu0 0.0
  %716 = vmatprep.subr.mxu0 0.0
  %717 = vmatpush1.msra.mxu0 0.0
  %718 = vmatprep.subr.mxu0 0.0
  %719 = vmatpush1.msra.mxu0 0.0
  %720 = vmatprep.subr.mxu0 0.0
  %721 = vmatpush1.msra.mxu0 0.0
  %722 = vmatprep.subr.mxu0 0.0
  %723 = vmatpush1.msra.mxu0 0.0
  %724 = vmatprep.subr.mxu0 0.0
  %725 = vmatpush1.msra.mxu0 0.0
  %726 = vmatprep.mubr.f32.mxu0 0.0
  %727 = vmatmul.mubr.f32.gmra.mrb[0].mxu0 %v589
  %v728 = vpop.f32.mrb[0].mxu0
  %v729 = vadd.f32 0.0, %v728
  %v730 = vpop.f32.mrb[0].mxu0
  %v731 = vadd.f32 0.0, %v730
  %732 = vdwg.mxu0
  %v733 = vmax.f32 %v658, 0.0
  %v734 = vmax.f32 %v660, 0.0
  %v735 = vmax.f32 %v729, 0.0
  %v736 = vmax.f32 %v731, 0.0
  %v737 = vand.u32 2147483647, %v658
  %v738 = vand.u32 2147483647, %v660
  %v739 = vand.u32 2147483647, %v729
  %v740 = vand.u32 2147483647, %v731
  %v741 = vsub.f32 0.0, %v737
  %v742 = vsub.f32 0.0, %v738
  %v743 = vsub.f32 0.0, %v739
  %v744 = vsub.f32 0.0, %v740
  %v745 = vmul.f32 %v741, 1.442695
  %v746 = vpow.pop %v745
  %v747 = vmul.f32 %v742, 1.442695
  %v748 = vpow.pop %v747
  %v749 = vmul.f32 %v743, 1.442695
  %v750 = vpow.pop %v749
  %v751 = vmul.f32 %v744, 1.442695
  %v752 = vpow.pop %v751
  %v753 = vadd.f32 %v746, 1.0
  %v754 = vlog2.pop %v753
  %v755 = vmul.f32 %v754, 0.6931472
  %v756 = vmul.f32 -0.5, %v746
  %v757 = vadd.f32 %v756, 1.0
  %v758 = vmul.f32 %v757, %v746
  %v759 = vand.u32 2147483647, %v746
  %vm760 = vcmp.lt.f32.partialorder %v759, 0.0004427343
  %v761 = vsel %vm760, %v758, %v755
  %v762 = vadd.f32 %v748, 1.0
  %v763 = vlog2.pop %v762
  %v764 = vmul.f32 %v763, 0.6931472
  %v765 = vmul.f32 -0.5, %v748
  %v766 = vadd.f32 %v765, 1.0
  %v767 = vmul.f32 %v766, %v748
  %v768 = vand.u32 2147483647, %v748
  %vm769 = vcmp.lt.f32.partialorder %v768, 0.0004427343
  %v770 = vsel %vm769, %v767, %v764
  %v771 = vadd.f32 %v750, 1.0
  %v772 = vlog2.pop %v771
  %v773 = vmul.f32 %v772, 0.6931472
  %v774 = vmul.f32 -0.5, %v750
  %v775 = vadd.f32 %v774, 1.0
  %v776 = vmul.f32 %v775, %v750
  %v777 = vand.u32 2147483647, %v750
  %vm778 = vcmp.lt.f32.partialorder %v777, 0.0004427343
  %v779 = vsel %vm778, %v776, %v773
  %v780 = vadd.f32 %v752, 1.0
  %v781 = vlog2.pop %v780
  %v782 = vmul.f32 %v781, 0.6931472
  %v783 = vmul.f32 -0.5, %v752
  %v784 = vadd.f32 %v783, 1.0
  %v785 = vmul.f32 %v784, %v752
  %v786 = vand.u32 2147483647, %v752
  %vm787 = vcmp.lt.f32.partialorder %v786, 0.0004427343
  %v788 = vsel %vm787, %v785, %v782
  %v789 = vadd.f32 %v733, %v761
  %v790 = vadd.f32 %v734, %v770
  %v791 = vadd.f32 %v735, %v779
  %v792 = vadd.f32 %v736, %v788
  %v797 = vcombine.low %v789, %v790
  %v798 = vcombine.low %v791, %v792
  %801 = vst [vmem:[%s2] sm:$0xff] %v797
  %802 = vst [vmem:[%s2 + $0x8] sm:$0xff] %v798
  // Predicated region
  $region10: #{mlnet_forward.1} parent=0 // pred_check
    _
  $region11: #{mlnet_forward.1} parent=0 // pred_check_branch
    %804 = sbr.rel (0) target = $region13
  $region12: #{mlnet_forward.1} parent=0 // pred_region
    _
  $region13: #{mlnet_forward.1} parent=0 // pred_fallthru
    _
  // Predicated region
  $region14: #{mlnet_forward.1} parent=0 // pred_check
    _
  $region15: #{mlnet_forward.1} parent=0 // pred_check_branch
    %806 = sbr.rel (0) target = $region17
  $region16: #{mlnet_forward.1} parent=0 // pred_region
    _
  $region17: #{mlnet_forward.1} parent=0 // pred_fallthru
    _

</llo_original>
